<compile_context>
chip_gen: v7x
topology: tpu7x:2x2x1
jax: 0.10.0
libtpu: 0.0.40
codegen_flags: <defaults>
</compile_context>

<pallas_src>
import functools

import jax
import jax.numpy as jnp
import numpy as np
from jax.experimental import pallas as pl
from jax.experimental.pallas import tpu as pltpu

_BN_EPS = 1e-5


# ---------------------------------------------------------------------------
# Pallas kernel 1: 3-D convolution (stride 1, pad K//2), bf16 MXU, f32 accum.
# ---------------------------------------------------------------------------
def _conv3d_kernel(x_ref, w_ref, b_ref, o_ref, s_ref, *, K, W, L):
    # x_ref : (1, 1, Rows, CF)  bf16  -- kw-folded input depth slice (d + kd)
    # w_ref : (1, K*CF, tCout)  bf16  -- weight slab for tap kd, (kh,kw,ci) order
    # b_ref : (1, tCout)        f32
    # o_ref : (1, 1, L, tCout)  f32   -- resident accumulator across the kd axis
    # s_ref : (1, 1, 2, tCout)  f32   -- per-(n, d, co) channel sum / sum-sq
    kd = pl.program_id(3)

    # Build the (L, K*CF) patch in VMEM: K kh-shifted row windows concatenated
    # along the reduction axis -> one large-K dot per grid step.
    parts = [x_ref[0, 0, kh * W: kh * W + L, :] for kh in range(K)]
    patch = parts[0] if K == 1 else jnp.concatenate(parts, axis=1)
    contrib = jnp.dot(patch, w_ref[0], preferred_element_type=jnp.float32)

    @pl.when(kd == 0)
    def _init():
        o_ref[0, 0] = contrib + b_ref[...]

    @pl.when(kd > 0)
    def _accum():
        o_ref[0, 0] += contrib

    @pl.when(kd == K - 1)
    def _stats():
        y = o_ref[0, 0]
        s_ref[0, 0] = jnp.concatenate(
            [jnp.sum(y, axis=0, keepdims=True),
             jnp.sum(y * y, axis=0, keepdims=True)], axis=0)


def conv3d_pallas(xs, w, b, K):
    """3-D conv, stride 1, padding K//2 ("same" for odd K).

    xs : list of (N, D, H, W, C_i) arrays; channels are logically concatenated
         in list order (== torch.cat(xs, dim=1)) but never materialized.
    w  : (K**3, Cin_total, Cout) f32, tap-major (kd, kh, kw) ordering.
    b  : (Cout,) f32.
    Returns (y, stats): y (N, D, H, W, Cout) f32 and stats (N, D, 2, Cout) f32
    holding per-depth-slice per-channel [sum, sum-of-squares].
    """
    if not isinstance(xs, (list, tuple)):
        xs = [xs]
    N, D, H, W = (int(s) for s in xs[0].shape[:4])
    Cin = sum(int(x.shape[-1]) for x in xs)
    Cout = int(w.shape[-1])

    # Pad tiny channel counts up to 8 (zero weights -> identical result).
    if Cin < 8:
        pad_c = 8 - Cin
        xs = list(xs[:-1]) + [jnp.pad(xs[-1], ((0, 0),) * 4 + ((0, pad_c),))]
        w = jnp.pad(w, ((0, 0), (0, pad_c), (0, 0)))
        Cin = 8

    pad = K // 2
    Dp, Hp = D + 2 * pad, H + 2 * pad
    Rows = Hp * W                 # rows per folded depth slice
    L = H * W                     # valid output rows per depth slice
    CF = K * Cin                  # kw-folded channel width

    # Spatial zero-pad + fold the kw taps into the channel dim, cast bf16.
    padded = [jnp.pad(x, ((0, 0), (pad, pad), (pad, pad), (pad, pad), (0, 0))
                      ).astype(jnp.bfloat16) for x in xs]
    parts = [xp[:, :, :, kw:kw + W, :] for kw in range(K) for xp in padded]
    xf = jnp.concatenate(parts, axis=-1) if len(parts) > 1 else parts[0]
    xf = xf.reshape(N, Dp, Rows, CF)

    # Weight: (K^3, Cin, Cout) -> (kd, (kh, kw, cin), Cout), bf16.
    wr = w.reshape(K, K * K * Cin, Cout).astype(jnp.bfloat16)
    br = b.reshape(1, Cout).astype(jnp.float32)

    tco = 256 if Cout % 256 == 0 else Cout
    nco = Cout // tco
    grid = (N, D, nco, K)         # kd (reduction) innermost

    y, stats = pl.pallas_call(
        functools.partial(_conv3d_kernel, K=K, W=W, L=L),
        out_shape=(jax.ShapeDtypeStruct((N, D, L, Cout), jnp.float32),
                   jax.ShapeDtypeStruct((N, D, 2, Cout), jnp.float32)),
        grid_spec=pltpu.PrefetchScalarGridSpec(
            num_scalar_prefetch=0,
            grid=grid,
            in_specs=[
                pl.BlockSpec((1, 1, Rows, CF),
                             lambda n, d, co, kd: (n, d + kd, 0, 0)),
                pl.BlockSpec((1, K * CF, tco),
                             lambda n, d, co, kd: (kd, 0, co)),
                pl.BlockSpec((1, tco),
                             lambda n, d, co, kd: (0, co)),
            ],
            out_specs=[
                pl.BlockSpec((1, 1, L, tco),
                             lambda n, d, co, kd: (n, d, 0, co)),
                pl.BlockSpec((1, 1, 2, tco),
                             lambda n, d, co, kd: (n, d, 0, co)),
            ],
        ),
        compiler_params=pltpu.CompilerParams(
            dimension_semantics=("parallel", "parallel", "parallel", "arbitrary"),
            vmem_limit_bytes=64 * 1024 * 1024),
    )(xf, wr, br)
    return y.reshape(N, D, H, W, Cout), stats


# ---------------------------------------------------------------------------
# Pallas kernel 2: per-channel affine (BN scale/shift) + ReLU, gridded, bf16.
# ---------------------------------------------------------------------------
def _affine_relu_kernel(y_ref, sc_ref, sh_ref, o_ref):
    o_ref[...] = jnp.maximum(
        y_ref[...] * sc_ref[...] + sh_ref[...], 0.0).astype(o_ref.dtype)


def _row_tile(rows, cols, max_elems=32768):
    t = rows
    while t % 2 == 0 and t > 8 and t * cols > max_elems:
        t //= 2
    if t != rows and t % 8 != 0:
        t = rows
    return t


def bn_relu_apply(y, stats, gamma, beta):
    """Training-mode BatchNorm3d (batch stats, biased var) + ReLU -> bf16."""
    N, D, H, W, C = y.shape
    cnt = float(N * D * H * W)
    tot = jnp.sum(stats, axis=(0, 1))                       # (2, C)
    mean = tot[0] / cnt
    var = jnp.maximum(tot[1] / cnt - mean * mean, 0.0)      # biased variance
    inv = jax.lax.rsqrt(var + _BN_EPS)
    scale = gamma * inv
    shift = beta - mean * scale

    R = N * D * H * W
    p = 1
    if C < 128 and 128 % C == 0 and R % (128 // C) == 0:
        p = 128 // C                                        # lane-dense packing
    Rp, Cp = R // p, C * p
    TR = _row_tile(Rp, Cp)

    out = pl.pallas_call(
        _affine_relu_kernel,
        out_shape=jax.ShapeDtypeStruct((Rp, Cp), jnp.bfloat16),
        grid_spec=pltpu.PrefetchScalarGridSpec(
            num_scalar_prefetch=0,
            grid=(Rp // TR,),
            in_specs=[
                pl.BlockSpec((TR, Cp), lambda i: (i, 0)),
                pl.BlockSpec((1, Cp), lambda i: (0, 0)),
                pl.BlockSpec((1, Cp), lambda i: (0, 0)),
            ],
            out_specs=pl.BlockSpec((TR, Cp), lambda i: (i, 0)),
        ),
        compiler_params=pltpu.CompilerParams(
            dimension_semantics=("parallel",),
            vmem_limit_bytes=32 * 1024 * 1024),
    )(y.reshape(Rp, Cp),
      jnp.tile(scale, p).reshape(1, Cp).astype(jnp.float32),
      jnp.tile(shift, p).reshape(1, Cp).astype(jnp.float32))
    return out.reshape(N, D, H, W, C)


# ---------------------------------------------------------------------------
# Glue ops (plain JAX): maxpool, trilinear upsample.
# ---------------------------------------------------------------------------
def maxpool3d_2(x):
    N, D, H, W, C = x.shape
    return x.reshape(N, D // 2, 2, H // 2, 2, W // 2, 2, C).max(axis=(2, 4, 6))


def _linear_upsample_axis(x, axis):
    S = x.shape[axis]
    So = 2 * S
    if S == 1:
        return jnp.concatenate([x, x], axis=axis)
    pos = jnp.arange(So, dtype=jnp.float32) * (S - 1) / (So - 1)  # align_corners
    lo = jnp.floor(pos).astype(jnp.int32)
    hi = jnp.minimum(lo + 1, S - 1)
    frac = pos - lo.astype(jnp.float32)
    xl = jnp.take(x, lo, axis=axis)
    xh = jnp.take(x, hi, axis=axis)
    shape = [1] * x.ndim
    shape[axis] = So
    frac = frac.reshape(shape)
    return xl * (1.0 - frac) + xh * frac


def upsample_trilinear_x2(x):   # NDHWC
    for ax in (1, 2, 3):
        x = _linear_upsample_axis(x, ax)
    return x


# ---------------------------------------------------------------------------
# UNet blocks
# ---------------------------------------------------------------------------
def double_conv(xs, p):
    y, st = conv3d_pallas(xs, p["w1"], p["b1"], 3)
    y = bn_relu_apply(y, st, p["g1"], p["be1"])
    y, st = conv3d_pallas([y], p["w2"], p["b2"], 3)
    y = bn_relu_apply(y, st, p["g2"], p["be2"])
    return y


def down_block(x, p):
    return double_conv([maxpool3d_2(x)], p)


def up_block(x1, x2, p):
    x1 = upsample_trilinear_x2(x1)
    dZ = x2.shape[1] - x1.shape[1]
    dY = x2.shape[2] - x1.shape[2]
    dX = x2.shape[3] - x1.shape[3]
    if dZ or dY or dX:
        x1 = jnp.pad(x1, ((0, 0),
                          (dZ // 2, dZ - dZ // 2),
                          (dY // 2, dY - dY // 2),
                          (dX // 2, dX - dX // 2),
                          (0, 0)))
    # torch.cat([x2, x1], dim=1) is fused into the conv's channel fold.
    return double_conv([x2, x1], p)


def unet_forward(params, x_ncdhw):
    x = jnp.transpose(x_ncdhw, (0, 2, 3, 4, 1)).astype(jnp.bfloat16)  # NDHWC
    x1 = double_conv([x], params["inc"])
    x2 = down_block(x1, params["down1"])
    x3 = down_block(x2, params["down2"])
    x4 = down_block(x3, params["down3"])
    x5 = down_block(x4, params["down4"])
    y = up_block(x5, x4, params["up1"])
    y = up_block(y, x3, params["up2"])
    y = up_block(y, x2, params["up3"])
    y = up_block(y, x1, params["up4"])
    logits, _ = conv3d_pallas([y], params["outc"]["w"], params["outc"]["b"], 1)
    return jnp.transpose(logits, (0, 4, 1, 2, 3))                     # NCDHW


# ---------------------------------------------------------------------------
# Deterministic parameter initialization (synthetic weights).
# ---------------------------------------------------------------------------
def _init_conv(key, cin, cout, k):
    wk, bk = jax.random.split(key)
    fan_in = cin * k ** 3
    w = jax.random.normal(wk, (k ** 3, cin, cout), jnp.float32) / np.sqrt(fan_in)
    b = 0.01 * jax.random.normal(bk, (cout,), jnp.float32)
    return w, b


def _init_double_conv(key, cin, cout):
    k1, k2 = jax.random.split(key)
    w1, b1 = _init_conv(k1, cin, cout, 3)
    w2, b2 = _init_conv(k2, cout, cout, 3)
    ones = jnp.ones((cout,), jnp.float32)
    zeros = jnp.zeros((cout,), jnp.float32)
    return dict(w1=w1, b1=b1, g1=ones, be1=zeros,
                w2=w2, b2=b2, g2=ones, be2=zeros)


def init_unet_params(key, n_channels, n_classes, bilinear=True):
    factor = 2 if bilinear else 1
    keys = jax.random.split(key, 10)
    params = dict(
        inc=_init_double_conv(keys[0], n_channels, 64),
        down1=_init_double_conv(keys[1], 64, 128),
        down2=_init_double_conv(keys[2], 128, 256),
        down3=_init_double_conv(keys[3], 256, 512),
        down4=_init_double_conv(keys[4], 512, 1024 // factor),
        up1=_init_double_conv(keys[5], 1024, 512 // factor),
        up2=_init_double_conv(keys[6], 512, 256 // factor),
        up3=_init_double_conv(keys[7], 256, 128 // factor),
        up4=_init_double_conv(keys[8], 128, 64),
    )
    wo, bo = _init_conv(keys[9], 64, n_classes, 1)
    params["outc"] = dict(w=wo, b=bo)
    return params


# ---------------------------------------------------------------------------
# Small self-checks against pure-JAX references (bf16-rounded inputs).
# ---------------------------------------------------------------------------
def _self_check():
    key = jax.random.PRNGKey(123)
    kx, kw, kb, kg = jax.random.split(key, 4)

    # --- conv K=3, two fused sources (exercises the up-block concat fusion) ---
    xa = jax.random.normal(kx, (1, 4, 4, 4, 3), jnp.float32)
    xb = jax.random.normal(kg, (1, 4, 4, 4, 5), jnp.float32)
    w = jax.random.normal(kw, (27, 8, 16), jnp.float32) * 0.2
    b = jax.random.normal(kb, (16,), jnp.float32)
    got, _ = conv3d_pallas([xa, xb], w, b, 3)
    xc = jnp.concatenate([xa, xb], axis=-1)
    xr = xc.astype(jnp.bfloat16).astype(jnp.float32)
    wr = w.astype(jnp.bfloat16).astype(jnp.float32)
    ref = jax.lax.conv_general_dilated(
        xr, wr.reshape(3, 3, 3, 8, 16), (1, 1, 1), "SAME",
        dimension_numbers=("NDHWC", "DHWIO", "NDHWC")) + b
    np.testing.assert_allclose(np.asarray(got), np.asarray(ref),
                               rtol=5e-3, atol=5e-3)

    # --- conv K=3 + training-mode BN + ReLU (exercises Cin<8 pad & stats) ---
    x = jax.random.normal(kx, (2, 4, 4, 4, 6), jnp.float32)
    w = jax.random.normal(kw, (27, 6, 16), jnp.float32) * 0.2
    b = 0.1 * jax.random.normal(kb, (16,), jnp.float32)
    g = 1.0 + 0.1 * jax.random.normal(kg, (16,), jnp.float32)
    be = 0.1 * jax.random.normal(kb, (16,), jnp.float32)
    y, st = conv3d_pallas([x], w, b, 3)
    got = bn_relu_apply(y, st, g, be).astype(jnp.float32)
    xr = x.astype(jnp.bfloat16).astype(jnp.float32)
    wr = w.astype(jnp.bfloat16).astype(jnp.float32)
    yr = jax.lax.conv_general_dilated(
        xr, wr.reshape(3, 3, 3, 6, 16), (1, 1, 1), "SAME",
        dimension_numbers=("NDHWC", "DHWIO", "NDHWC")) + b
    m = yr.mean(axis=(0, 1, 2, 3))
    v = ((yr - m) ** 2).mean(axis=(0, 1, 2, 3))
    ref = jnp.maximum((yr - m) * jax.lax.rsqrt(v + _BN_EPS) * g + be, 0.0)
    np.testing.assert_allclose(np.asarray(got), np.asarray(ref),
                               rtol=2e-2, atol=2e-2)

    # --- 1x1x1 conv (OutConv path) ---
    w1 = jax.random.normal(kw, (1, 6, 8), jnp.float32) * 0.3
    b1 = jax.random.normal(kb, (8,), jnp.float32)
    got1, _ = conv3d_pallas([x], w1, b1, 1)
    wr1 = w1.astype(jnp.bfloat16).astype(jnp.float32)
    ref1 = jnp.einsum("ndhwc,cf->ndhwf", xr, wr1[0]) + b1
    np.testing.assert_allclose(np.asarray(got1), np.asarray(ref1),
                               rtol=5e-3, atol=5e-3)


if __name__ == "__main__":
    _self_check()

    n_channels, n_classes = 1, 2
    key = jax.random.PRNGKey(0)
    pkey, xkey = jax.random.split(key)
    params = init_unet_params(pkey, n_channels, n_classes, bilinear=True)

    # PyTorch-style NCDHW input: batch=1, channels=1, D=H=W=16
    x = jax.random.normal(xkey, (1, n_channels, 16, 16, 16), jnp.float32)

    fwd = jax.jit(unet_forward)
    logits = fwd(params, x)
    logits = jax.block_until_ready(logits)

    assert logits.shape == (1, n_classes, 16, 16, 16), logits.shape
    assert bool(jnp.all(jnp.isfinite(logits)))
    print("KERNEL_OK")
</pallas_src>

<mosaic_0001>
module attributes {stable_mosaic.version = 11 : i64} {
  func.func @_conv3d_kernel(%arg0: i32, %arg1: i32, %arg2: i32, %arg3: i32, %arg4: memref<1x1x24x24xbf16, #tpu.memory_space<vmem>>, %arg5: memref<1x72x16xbf16, #tpu.memory_space<vmem>>, %arg6: memref<1x16xf32, #tpu.memory_space<vmem>>, %arg7: memref<1x1x16x16xf32, #tpu.memory_space<vmem>>, %arg8: memref<1x1x2x16xf32, #tpu.memory_space<vmem>>) attributes {dimension_semantics = [#tpu.dimension_semantics<parallel>, #tpu.dimension_semantics<parallel>, #tpu.dimension_semantics<parallel>, #tpu.dimension_semantics<arbitrary>], iteration_bounds = array<i64: 1, 4, 1, 3>, scalar_prefetch = 0 : i64, scratch_operands = 0 : i64, tpu.core_type = #tpu.core_type<tc>, window_params = [{transform_indices = @transform_0, window_bounds = array<i64: 1, 1, 24, 24>}, {transform_indices = @transform_1, window_bounds = array<i64: 1, 72, 16>}, {transform_indices = @transform_2, window_bounds = array<i64: 1, 16>}, {transform_indices = @transform_3, window_bounds = array<i64: 1, 1, 16, 16>}, {transform_indices = @transform_4, window_bounds = array<i64: 1, 1, 2, 16>}]} {
    %c0 = arith.constant 0 : index
    %c0_0 = arith.constant 0 : index
    %c0_1 = arith.constant 0 : index
    %c0_2 = arith.constant 0 : index
    %0 = vector.load %arg4[%c0, %c0_0, %c0_1, %c0_2] : memref<1x1x24x24xbf16, #tpu.memory_space<vmem>>, vector<1x1x16x24xbf16>
    %1 = vector.shape_cast %0 : vector<1x1x16x24xbf16> to vector<16x24xbf16>
    %c0_3 = arith.constant 0 : index
    %c0_4 = arith.constant 0 : index
    %c4 = arith.constant 4 : index
    %c0_5 = arith.constant 0 : index
    %2 = vector.load %arg4[%c0_3, %c0_4, %c4, %c0_5] : memref<1x1x24x24xbf16, #tpu.memory_space<vmem>>, vector<1x1x16x24xbf16>
    %3 = vector.shape_cast %2 : vector<1x1x16x24xbf16> to vector<16x24xbf16>
    %c0_6 = arith.constant 0 : index
    %c0_7 = arith.constant 0 : index
    %c8 = arith.constant 8 : index
    %c0_8 = arith.constant 0 : index
    %4 = vector.load %arg4[%c0_6, %c0_7, %c8, %c0_8] : memref<1x1x24x24xbf16, #tpu.memory_space<vmem>>, vector<1x1x16x24xbf16>
    %5 = vector.shape_cast %4 : vector<1x1x16x24xbf16> to vector<16x24xbf16>
    %6 = tpu.concatenate %1, %3, %5 in 1 : vector<16x24xbf16>, vector<16x24xbf16>, vector<16x24xbf16> -> vector<16x72xbf16>
    %c0_9 = arith.constant 0 : index
    %c0_10 = arith.constant 0 : index
    %c0_11 = arith.constant 0 : index
    %7 = vector.load %arg5[%c0_9, %c0_10, %c0_11] : memref<1x72x16xbf16, #tpu.memory_space<vmem>>, vector<1x72x16xbf16>
    %8 = vector.shape_cast %7 : vector<1x72x16xbf16> to vector<72x16xbf16>
    %cst = arith.constant dense<0.000000e+00> : vector<16x16xf32>
    %9 = tpu.matmul %6, %8, %cst {dimension_numbers = #tpu.dot_dimension_numbers<[1], [0], [0], [1], [0, 0, 1, 1], [], []>} : vector<16x72xbf16>, vector<72x16xbf16>, vector<16x16xf32> -> vector<16x16xf32>
    %c0_i32 = arith.constant 0 : i32
    %10 = arith.cmpi eq, %arg3, %c0_i32 : i32
    %11 = arith.extui %10 : i1 to i32
    %c0_i32_12 = arith.constant 0 : i32
    %12 = arith.cmpi ne, %11, %c0_i32_12 : i32
    scf.if %12 {
      %c0_16 = arith.constant 0 : index
      %c0_17 = arith.constant 0 : index
      %19 = vector.load %arg6[%c0_16, %c0_17] : memref<1x16xf32, #tpu.memory_space<vmem>>, vector<1x16xf32>
      %20 = vector.broadcast %19 : vector<1x16xf32> to vector<16x16xf32>
      %21 = arith.addf %9, %20 : vector<16x16xf32>
      %c0_18 = arith.constant 0 : index
      %c0_19 = arith.constant 0 : index
      %c0_20 = arith.constant 0 : index
      %c0_21 = arith.constant 0 : index
      %22 = vector.load %arg7[%c0_18, %c0_19, %c0_20, %c0_21] : memref<1x1x16x16xf32, #tpu.memory_space<vmem>>, vector<1x1x16x16xf32>
      %23 = vector.shape_cast %22 : vector<1x1x16x16xf32> to vector<16x16xf32>
      %24 = vector.shape_cast %21 : vector<16x16xf32> to vector<1x1x16x16xf32>
      tpu.vector_store %arg7[%c0_18, %c0_19, %c0_20, %c0_21], %24 {strides = array<i32>} : memref<1x1x16x16xf32, #tpu.memory_space<vmem>>, vector<1x1x16x16xf32>,
    } else {
    }
    %c0_i32_13 = arith.constant 0 : i32
    %13 = arith.cmpi sgt, %arg3, %c0_i32_13 : i32
    %14 = arith.extui %13 : i1 to i32
    %c0_i32_14 = arith.constant 0 : i32
    %15 = arith.cmpi ne, %14, %c0_i32_14 : i32
    scf.if %15 {
      %c0_16 = arith.constant 0 : index
      %c0_17 = arith.constant 0 : index
      %c0_18 = arith.constant 0 : index
      %c0_19 = arith.constant 0 : index
      %19 = vector.load %arg7[%c0_16, %c0_17, %c0_18, %c0_19] : memref<1x1x16x16xf32, #tpu.memory_space<vmem>>, vector<1x1x16x16xf32>
      %20 = vector.shape_cast %19 : vector<1x1x16x16xf32> to vector<16x16xf32>
      %21 = arith.addf %20, %9 : vector<16x16xf32>
      %c0_20 = arith.constant 0 : index
      %c0_21 = arith.constant 0 : index
      %c0_22 = arith.constant 0 : index
      %c0_23 = arith.constant 0 : index
      %22 = vector.load %arg7[%c0_20, %c0_21, %c0_22, %c0_23] : memref<1x1x16x16xf32, #tpu.memory_space<vmem>>, vector<1x1x16x16xf32>
      %23 = vector.shape_cast %22 : vector<1x1x16x16xf32> to vector<16x16xf32>
      %24 = vector.shape_cast %21 : vector<16x16xf32> to vector<1x1x16x16xf32>
      tpu.vector_store %arg7[%c0_20, %c0_21, %c0_22, %c0_23], %24 {strides = array<i32>} : memref<1x1x16x16xf32, #tpu.memory_space<vmem>>, vector<1x1x16x16xf32>,
    } else {
    }
    %c2_i32 = arith.constant 2 : i32
    %16 = arith.cmpi eq, %arg3, %c2_i32 : i32
    %17 = arith.extui %16 : i1 to i32
    %c0_i32_15 = arith.constant 0 : i32
    %18 = arith.cmpi ne, %17, %c0_i32_15 : i32
    scf.if %18 {
      %c0_16 = arith.constant 0 : index
      %c0_17 = arith.constant 0 : index
      %c0_18 = arith.constant 0 : index
      %c0_19 = arith.constant 0 : index
      %19 = vector.load %arg7[%c0_16, %c0_17, %c0_18, %c0_19] : memref<1x1x16x16xf32, #tpu.memory_space<vmem>>, vector<1x1x16x16xf32>
      %20 = vector.shape_cast %19 : vector<1x1x16x16xf32> to vector<16x16xf32>
      %cst_20 = arith.constant dense<0.000000e+00> : vector<16xf32>
      %21 = vector.multi_reduction <add>, %20, %cst_20 [0] : vector<16x16xf32> to vector<16xf32>
      %22 = vector.shape_cast %21 : vector<16xf32> to vector<1x16xf32>
      %23 = arith.mulf %20, %20 : vector<16x16xf32>
      %cst_21 = arith.constant dense<0.000000e+00> : vector<16xf32>
      %24 = vector.multi_reduction <add>, %23, %cst_21 [0] : vector<16x16xf32> to vector<16xf32>
      %25 = vector.shape_cast %24 : vector<16xf32> to vector<1x16xf32>
      %26 = tpu.concatenate %22, %25 in 0 : vector<1x16xf32>, vector<1x16xf32> -> vector<2x16xf32>
      %c0_22 = arith.constant 0 : index
      %c0_23 = arith.constant 0 : index
      %c0_24 = arith.constant 0 : index
      %c0_25 = arith.constant 0 : index
      %27 = vector.load %arg8[%c0_22, %c0_23, %c0_24, %c0_25] : memref<1x1x2x16xf32, #tpu.memory_space<vmem>>, vector<1x1x2x16xf32>
      %28 = vector.shape_cast %27 : vector<1x1x2x16xf32> to vector<2x16xf32>
      %29 = vector.shape_cast %26 : vector<2x16xf32> to vector<1x1x2x16xf32>
      tpu.vector_store %arg8[%c0_22, %c0_23, %c0_24, %c0_25], %29 {strides = array<i32>} : memref<1x1x2x16xf32, #tpu.memory_space<vmem>>, vector<1x1x2x16xf32>,
    } else {
    }
    return
  }
  func.func @transform_0(%arg0: i32, %arg1: i32, %arg2: i32, %arg3: i32) -> (i32, i32, i32, i32) {
    %0 = arith.addi %arg1, %arg3 : i32
    %c0_i32 = arith.constant 0 : i32
    %c0_i32_0 = arith.constant 0 : i32
    %c0_i32_1 = arith.constant 0 : i32
    return %arg0, %0, %c0_i32, %c0_i32_0 : i32, i32, i32, i32
  }
  func.func @transform_1(%arg0: i32, %arg1: i32, %arg2: i32, %arg3: i32) -> (i32, i32, i32) {
    %c0_i32 = arith.constant 0 : i32
    %c0_i32_0 = arith.constant 0 : i32
    return %arg3, %c0_i32, %arg2 : i32, i32, i32
  }
  func.func @transform_2(%arg0: i32, %arg1: i32, %arg2: i32, %arg3: i32) -> (i32, i32) {
    %c0_i32 = arith.constant 0 : i32
    %c0_i32_0 = arith.constant 0 : i32
    return %c0_i32, %arg2 : i32, i32
  }
  func.func @transform_3(%arg0: i32, %arg1: i32, %arg2: i32, %arg3: i32) -> (i32, i32, i32, i32) {
    %c0_i32 = arith.constant 0 : i32
    %c0_i32_0 = arith.constant 0 : i32
    return %arg0, %arg1, %c0_i32, %arg2 : i32, i32, i32, i32
  }
  func.func @transform_4(%arg0: i32, %arg1: i32, %arg2: i32, %arg3: i32) -> (i32, i32, i32, i32) {
    %c0_i32 = arith.constant 0 : i32
    %c0_i32_0 = arith.constant 0 : i32
    return %arg0, %arg1, %c0_i32, %arg2 : i32, i32, i32, i32
  }
}

</mosaic_0001>

<llo_original>
// kernel: tpu_custom_call.1
$region0: #{tpu_custom_call.1}
  #allocation0 [shape = 'u32[]', space=smem, size = 0x4, offset = 0x4, fixed_abs, tag = 'smem constant byte address 0x4 - core index']
  #allocation1 [shape = 'u32[144,128]{1,0:T(1,128)}', space=vmem, size = 0x12000, scoped, tag = 'internal scratch']
  %s0 = inlined_call_operand.hbm [shape: bf16[1,6,24,24], index: 0, kind: input, shape index: {}]
  %s1 = inlined_call_operand.hbm [shape: bf16[3,72,16], index: 1, kind: input, shape index: {}]
  %s2 = inlined_call_operand.hbm [shape: f32[1,16], index: 2, kind: input, shape index: {}]
  %s3 = inlined_call_operand.hbm [shape: f32[1,4,16,16], index: 3, kind: output, shape index: {0}]
  %s4 = inlined_call_operand.hbm [shape: f32[1,4,2,16], index: 4, kind: output, shape index: {1}]
  %5 = xla_tuple %s3, %s4
  %s6 = sld [smem:[#allocation0]]
  $region77: #{tpu_custom_call.1} parent=0
    _
  %s8 = ssub.s32 1, %s6
  %s9 = scalar_select 0, %s8, %s6
  $region1: #{tpu_custom_call.1} parent=0
    #allocation2 [shape = 'u8[12288]{0}', space=vmem, size = 0x3000, scoped, tag = 'input window, operand 0']
    #allocation3 [shape = 's32[2]{0}', space=sflag, size = 0x8, scoped, tag = 'scoped memory for tpu_custom_call.1']
    #allocation4 [shape = 's32[2]{0}', space=sflag, size = 0x8, scoped, tag = 'scoped memory for tpu_custom_call.1']
    #allocation5 [shape = 'u8[36864]{0}', space=vmem, size = 0x9000, scoped, tag = 'input window, operand 1']
    #allocation6 [shape = 's32[2]{0}', space=sflag, size = 0x8, scoped, tag = 'scoped memory for tpu_custom_call.1']
    #allocation7 [shape = 'u8[512]{0}', space=vmem, size = 0x400, scoped, tag = 'input window, operand 2, single buffered']
    #allocation8 [shape = 'u8[16384]{0}', space=vmem, size = 0x4000, scoped, tag = 'output window, operand 0']
    #allocation9 [shape = 'u8[2048]{0}', space=vmem, size = 0x800, scoped, tag = 'output window, operand 1']
    #allocation10 [shape = 's32[2]{0}', space=sflag, size = 0x8, scoped, tag = 'scoped memory for tpu_custom_call.1']
    %10 = vsyncpa [#allocation3], 0
    %s11 = scalar_lea.sflag [#allocation3], 1
    %12 = vsyncpa %s11, 0
    %13 = vsyncpa [#allocation6], 0
    %s14 = scalar_lea.sflag [#allocation6], 1
    %15 = vsyncpa %s14, 0
    %16 = vsyncpa [#allocation4], 0
    %s17 = scalar_lea.sflag [#allocation4], 1
    %18 = vsyncpa %s17, 0
    %19 = vsyncpa [#allocation10], 0
    %s20 = scalar_lea.sflag [#allocation10], 1
    %21 = vsyncpa %s20, 0
    loop: start=0, step=1, limit=14
    $region2: #{tpu_custom_call.1} parent=1 // loop_pre_header
      _
    $region3: #{tpu_custom_call.1} parent=1 // loop_header
      %s23 = sphi 0, %s27
      %p24 = scmp.ge.s32.totalorder %s23, 14
      %s30 = sphi 0, %s56
      %s31 = sphi 0, %s52
      %s32 = sphi 0, %s48
      %s33 = sphi 0, %s44
      %s34 = sphi 0, %s30
      %s35 = sphi 0, %s31
      %s36 = sphi 0, %s32
      %s37 = sphi 0, %s33
      %s38 = sphi 0, %s34
      %s39 = sphi 0, %s35
      %s40 = sphi 0, %s36
      %s41 = sphi 0, %s37
      %s63 = sphi 0, %s65
      %s66 = sphi 0, %s63
      %s67 = sphi 0, %s66
      %s83 = sphi 0, %s67
      %s91 = sphi 0, %s93
      %s94 = sphi 0, %s91
      %s95 = sphi 0, %s94
      %s111 = sphi 0, %s95
      %s117 = sphi 0, %s119
      %s120 = sphi 0, %s117
      %s121 = sphi 0, %s120
      %s137 = sphi 0, %s121
      %s147 = sphi 0, %s149
      %s150 = sphi 0, %s147
      %s151 = sphi 0, %s150
      %s167 = sphi 0, %s151
      %s177 = sphi 0, %s179
      %s180 = sphi 0, %s177
      %s181 = sphi 0, %s180
      %s197 = sphi 0, %s181
    $region4: #{tpu_custom_call.1} parent=1 // loop_header_branch
      %26 = sbr.rel (%p24) target = $region8
    $region5: #{tpu_custom_call.1} parent=1 // loop_body
      %s28 = ssub.s32 %s23, 1
      %s29 = ssub.s32 %s23, 2
      %s42 = sadd.s32 1, %s33
      %p43 = scmp.ge.s32.totalorder %s42, 3
      %s44 = scalar_select %p43, 0, %s42
      %s45 = sadd.s32 1, %s32
      %s46 = scalar_select %p43, %s45, %s32
      %p47 = scmp.ge.s32.totalorder %s46, 1
      %s48 = scalar_select %p47, 0, %s46
      %s49 = sadd.s32 1, %s31
      %s50 = scalar_select %p47, %s49, %s31
      %p51 = scmp.ge.s32.totalorder %s50, 4
      %s52 = scalar_select %p51, 0, %s50
      %s53 = sadd.s32 1, %s30
      %s54 = scalar_select %p51, %s53, %s30
      %p55 = scmp.ge.s32.totalorder %s54, 1
      %s56 = scalar_select %p55, 0, %s54
      %s57 = sadd.s32 %s31, %s33
      %s58 = sadd.s32 %s52, %s44
      %s59 = ssub.s32 %s30, %s56
      %s60 = ssub.s32 %s57, %s58
      %s61 = sor.u32 %s59, %s60
      %p62 = scmp.eq.s32.totalorder %s61, 0
      %s64 = sadd.s32 %s63, 1
      %s65 = scalar_select %p62, %s63, %s64
      %p68 = pneg %p62
      %p69 = scmp.eq.s32.totalorder %s23, 11
      %p70 = por %p68, %p69
      %p71 = scmp.ne.s32.totalorder %s63, %s66
      %p72 = scmp.eq.s32.totalorder %s23, 0
      %p73 = por %p71, %p72
      %p74 = scmp.ne.s32.totalorder %s63, %s66
      %p75 = scmp.eq.s32.totalorder %s28, 11
      %p76 = por %p74, %p75
      %p77 = scmp.ne.s32.totalorder %s66, %s67
      %p78 = scmp.eq.s32.totalorder %s28, 0
      %p79 = por %p77, %p78
      %p80 = scmp.ne.s32.totalorder %s66, %s67
      %p81 = scmp.eq.s32.totalorder %s29, 11
      %p82 = por %p80, %p81
      %p84 = scmp.ne.s32.totalorder %s67, %s83
      %p85 = scmp.eq.s32.totalorder %s29, 0
      %p86 = por %p84, %p85
      %s87 = ssub.s32 %s33, %s44
      %s88 = ssub.s32 %s32, %s48
      %s89 = sor.u32 %s87, %s88
      %p90 = scmp.eq.s32.totalorder %s89, 0
      %s92 = sadd.s32 %s91, 1
      %s93 = scalar_select %p90, %s91, %s92
      %p96 = pneg %p90
      %p97 = scmp.eq.s32.totalorder %s23, 11
      %p98 = por %p96, %p97
      %p99 = scmp.ne.s32.totalorder %s91, %s94
      %p100 = scmp.eq.s32.totalorder %s23, 0
      %p101 = por %p99, %p100
      %p102 = scmp.ne.s32.totalorder %s91, %s94
      %p103 = scmp.eq.s32.totalorder %s28, 11
      %p104 = por %p102, %p103
      %p105 = scmp.ne.s32.totalorder %s94, %s95
      %p106 = scmp.eq.s32.totalorder %s28, 0
      %p107 = por %p105, %p106
      %p108 = scmp.ne.s32.totalorder %s94, %s95
      %p109 = scmp.eq.s32.totalorder %s29, 11
      %p110 = por %p108, %p109
      %p112 = scmp.ne.s32.totalorder %s95, %s111
      %p113 = scmp.eq.s32.totalorder %s29, 0
      %p114 = por %p112, %p113
      %s115 = ssub.s32 %s32, %s48
      %p116 = scmp.eq.s32.totalorder %s115, 0
      %s118 = sadd.s32 %s117, 1
      %s119 = scalar_select %p116, %s117, %s118
      %p122 = pneg %p116
      %p123 = scmp.eq.s32.totalorder %s23, 11
      %p124 = por %p122, %p123
      %p125 = scmp.ne.s32.totalorder %s117, %s120
      %p126 = scmp.eq.s32.totalorder %s23, 0
      %p127 = por %p125, %p126
      %p128 = scmp.ne.s32.totalorder %s117, %s120
      %p129 = scmp.eq.s32.totalorder %s28, 11
      %p130 = por %p128, %p129
      %p131 = scmp.ne.s32.totalorder %s120, %s121
      %p132 = scmp.eq.s32.totalorder %s28, 0
      %p133 = por %p131, %p132
      %p134 = scmp.ne.s32.totalorder %s120, %s121
      %p135 = scmp.eq.s32.totalorder %s29, 11
      %p136 = por %p134, %p135
      %p138 = scmp.ne.s32.totalorder %s121, %s137
      %p139 = scmp.eq.s32.totalorder %s29, 0
      %p140 = por %p138, %p139
      %s141 = ssub.s32 %s30, %s56
      %s142 = ssub.s32 %s31, %s52
      %s143 = sor.u32 %s141, %s142
      %s144 = ssub.s32 %s32, %s48
      %s145 = sor.u32 %s143, %s144
      %p146 = scmp.eq.s32.totalorder %s145, 0
      %s148 = sadd.s32 %s147, 1
      %s149 = scalar_select %p146, %s147, %s148
      %p152 = pneg %p146
      %p153 = scmp.eq.s32.totalorder %s23, 11
      %p154 = por %p152, %p153
      %p155 = scmp.ne.s32.totalorder %s147, %s150
      %p156 = scmp.eq.s32.totalorder %s23, 0
      %p157 = por %p155, %p156
      %p158 = scmp.ne.s32.totalorder %s147, %s150
      %p159 = scmp.eq.s32.totalorder %s28, 11
      %p160 = por %p158, %p159
      %p161 = scmp.ne.s32.totalorder %s150, %s151
      %p162 = scmp.eq.s32.totalorder %s28, 0
      %p163 = por %p161, %p162
      %p164 = scmp.ne.s32.totalorder %s150, %s151
      %p165 = scmp.eq.s32.totalorder %s29, 11
      %p166 = por %p164, %p165
      %p168 = scmp.ne.s32.totalorder %s151, %s167
      %p169 = scmp.eq.s32.totalorder %s29, 0
      %p170 = por %p168, %p169
      %s171 = ssub.s32 %s30, %s56
      %s172 = ssub.s32 %s31, %s52
      %s173 = sor.u32 %s171, %s172
      %s174 = ssub.s32 %s32, %s48
      %s175 = sor.u32 %s173, %s174
      %p176 = scmp.eq.s32.totalorder %s175, 0
      %s178 = sadd.s32 %s177, 1
      %s179 = scalar_select %p176, %s177, %s178
      %p182 = pneg %p176
      %p183 = scmp.eq.s32.totalorder %s23, 11
      %p184 = por %p182, %p183
      %p185 = scmp.ne.s32.totalorder %s177, %s180
      %p186 = scmp.eq.s32.totalorder %s23, 0
      %p187 = por %p185, %p186
      %p188 = scmp.ne.s32.totalorder %s177, %s180
      %p189 = scmp.eq.s32.totalorder %s28, 11
      %p190 = por %p188, %p189
      %p191 = scmp.ne.s32.totalorder %s180, %s181
      %p192 = scmp.eq.s32.totalorder %s28, 0
      %p193 = por %p191, %p192
      %p194 = scmp.ne.s32.totalorder %s180, %s181
      %p195 = scmp.eq.s32.totalorder %s29, 11
      %p196 = por %p194, %p195
      %p198 = scmp.ne.s32.totalorder %s181, %s197
      %p199 = scmp.eq.s32.totalorder %s29, 0
      %p200 = por %p198, %p199
      %p201 = scmp.le.s32.totalorder 1, %s23
      %p202 = scmp.lt.s32.totalorder %s23, 13
      %p203 = pnand %p201, %p202
      %p204 = pneg %p203
      // Predicated region
      $region9: #{tpu_custom_call.1} parent=5 // pred_check
        _
      $region10: #{tpu_custom_call.1} parent=5 // pred_check_branch
        %206 = sbr.rel (%p203) target = $region12
      $region11: #{tpu_custom_call.1} parent=5 // pred_region
        %s207 = ssub.s32 %s23, 1
        // Predicated region
        $region13: #{tpu_custom_call.1} parent=11 // pred_check
          %p208 = pneg %p133
        $region14: #{tpu_custom_call.1} parent=11 // pred_check_branch
          %210 = sbr.rel (%p208) target = $region16
        $region15: #{tpu_custom_call.1} parent=11 // pred_region
          %s212 = ssub.s32 16, 16
          %213 = vsyncadd [#allocation6], %s212
          %s214 = smul.addr %s36, 16
          %s215 = scalar_lea.hbm %s2, %s214
          %s217 = sshll.u32 [#allocation7], 4
          %s218 = int_to_ptr.vmem [resolvable:$true] %s217
          %220 = dma.hbm_to_vmem [thread:$0]  %s215, 16, %s218, [#allocation6]
        $region16: #{tpu_custom_call.1} parent=11 // pred_fallthru
          _
      $region12: #{tpu_custom_call.1} parent=5 // pred_fallthru
        _
      %p221 = scmp.lt.s32.totalorder %s23, 12
      // Predicated region
      $region17: #{tpu_custom_call.1} parent=5 // pred_check
        %p222 = pneg %p221
      $region18: #{tpu_custom_call.1} parent=5 // pred_check_branch
        %224 = sbr.rel (%p222) target = $region20
      $region19: #{tpu_custom_call.1} parent=5 // pred_region
        // Predicated region
        $region21: #{tpu_custom_call.1} parent=19 // pred_check
          %p225 = pneg %p73
        $region22: #{tpu_custom_call.1} parent=19 // pred_check_branch
          %227 = sbr.rel (%p225) target = $region24
        $region23: #{tpu_custom_call.1} parent=19 // pred_region
          %s228 = sand.u32 %s63, 1
          %s229 = scalar_lea.sflag [#allocation3], %s228
          %s230 = sand.u32 %s63, 1
          %s231 = smul.addr %s230, 12
          %s232 = scalar_lea.vmem [#allocation2], %s231
          %s233 = sadd.s32 %s31, %s33
          %s235 = ssub.s32 192, 192
          %236 = vsyncadd %s229, %s235
          %s237 = smul.addr %s233, 3
          %s238 = smul.addr %s30, 18
          %s239 = sadd.s32 %s237, %s238
          %s240 = smul.addr %s239, 64
          %s241 = scalar_lea.hbm %s0, %s240
          %s242 = sshll.u32 %s232, 4
          %s243 = int_to_ptr.vmem [resolvable:$true] %s242
          %248 = dma.hbm_to_vmem [thread:$0]  %s241, 192, %s243, %s229, 64, 64, 4
        $region24: #{tpu_custom_call.1} parent=19 // pred_fallthru
          _
        // Predicated region
        $region25: #{tpu_custom_call.1} parent=19 // pred_check
          %p249 = pneg %p101
        $region26: #{tpu_custom_call.1} parent=19 // pred_check_branch
          %251 = sbr.rel (%p249) target = $region28
        $region27: #{tpu_custom_call.1} parent=19 // pred_region
          %s252 = sand.u32 %s23, 1
          %s253 = scalar_lea.sflag [#allocation6], %s252
          %s254 = sand.u32 %s91, 1
          %s255 = smul.addr %s254, 36
          %s256 = scalar_lea.vmem [#allocation5], %s255
          %s258 = ssub.s32 576, 576
          %259 = vsyncadd %s253, %s258
          %s260 = smul.addr %s33, 9
          %s261 = sadd.s32 %s32, %s260
          %s262 = smul.addr %s261, 64
          %s263 = scalar_lea.hbm %s1, %s262
          %s264 = sshll.u32 %s256, 4
          %s265 = int_to_ptr.vmem [resolvable:$true] %s264
          %270 = dma.hbm_to_vmem [thread:$0]  %s263, 576, %s265, %s253, 64, 64, 4
        $region28: #{tpu_custom_call.1} parent=19 // pred_fallthru
          _
      $region20: #{tpu_custom_call.1} parent=5 // pred_fallthru
        _
      %p271 = scmp.le.s32.totalorder 1, %s23
      %p272 = scmp.lt.s32.totalorder %s23, 13
      %p273 = pnand %p271, %p272
      %p274 = pneg %p273
      // Predicated region
      $region29: #{tpu_custom_call.1} parent=5 // pred_check
        _
      $region30: #{tpu_custom_call.1} parent=5 // pred_check_branch
        %276 = sbr.rel (%p273) target = $region32
      $region31: #{tpu_custom_call.1} parent=5 // pred_region
        %s277 = ssub.s32 %s23, 1
        %s278 = sand.u32 %s66, 1
        %s279 = scalar_lea.sflag [#allocation3], %s278
        %s280 = sand.u32 %s66, 1
        %s281 = smul.addr %s280, 12
        %s282 = scalar_lea.vmem [#allocation2], %s281
        // Predicated region
        $region33: #{tpu_custom_call.1} parent=31 // pred_check
          %p283 = pneg %p79
        $region34: #{tpu_custom_call.1} parent=31 // pred_check_branch
          %285 = sbr.rel (%p283) target = $region36
        $region35: #{tpu_custom_call.1} parent=31 // pred_region
          %286 = dma.done %s279, 192
        $region36: #{tpu_custom_call.1} parent=31 // pred_fallthru
          _
        %s287 = sand.u32 %s28, 1
        %s288 = scalar_lea.sflag [#allocation6], %s287
        %s289 = sand.u32 %s94, 1
        %s290 = smul.addr %s289, 36
        %s291 = scalar_lea.vmem [#allocation5], %s290
        // Predicated region
        $region37: #{tpu_custom_call.1} parent=31 // pred_check
          %p292 = pneg %p107
        $region38: #{tpu_custom_call.1} parent=31 // pred_check_branch
          %294 = sbr.rel (%p292) target = $region40
        $region39: #{tpu_custom_call.1} parent=31 // pred_region
          %295 = dma.done %s288, 576
        $region40: #{tpu_custom_call.1} parent=31 // pred_fallthru
          _
        // Predicated region
        $region41: #{tpu_custom_call.1} parent=31 // pred_check
          %p296 = pneg %p133
        $region42: #{tpu_custom_call.1} parent=31 // pred_check_branch
          %298 = sbr.rel (%p296) target = $region44
        $region43: #{tpu_custom_call.1} parent=31 // pred_region
          %299 = dma.done [#allocation6], 16
        $region44: #{tpu_custom_call.1} parent=31 // pred_fallthru
          _
        %s300 = sand.u32 %s66, 1
        %s301 = scalar_lea.sflag [#allocation3], %s300
        %s302 = sand.u32 %s66, 1
        %s303 = smul.addr %s302, 12
        %s304 = scalar_lea.vmem [#allocation2], %s303
        %p305 = pneg %p79
        %p306 = pneg %p76
        %s307 = sand.u32 %s28, 1
        %s308 = scalar_lea.sflag [#allocation6], %s307
        %s309 = sand.u32 %s94, 1
        %s310 = smul.addr %s309, 36
        %s311 = scalar_lea.vmem [#allocation5], %s310
        %p312 = pneg %p107
        %p313 = pneg %p104
        %p314 = pneg %p133
        %p315 = pneg %p130
        %p316 = pneg %p163
        %p317 = pneg %p160
        %s318 = sand.u32 %s150, 1
        %s319 = scalar_lea.sflag [#allocation4], %s318
        %s320 = sand.u32 %s150, 1
        %s321 = smul.addr %s320, 16
        %s322 = scalar_lea.vmem [#allocation8], %s321
        %p323 = pneg %p193
        %p324 = pneg %p190
        %s325 = sand.u32 %s180, 1
        %s326 = scalar_lea.sflag [#allocation10], %s325
        %s327 = sand.u32 %s180, 1
        %s328 = smul.addr %s327, 2
        %s329 = scalar_lea.vmem [#allocation9], %s328
        %s330 = sadd.s32 %s35, %s37
        %v332 = vld [vmem:[%s282] sm:$0xf]
        %v333 = vld [vmem:[%s282 + $0x4] sm:$0xf]
        %v334 = vld [vmem:[%s282] sm:$0xc]
        %v335 = vld [vmem:[%s282 + $0x8] sm:$0x3]
        %v336 = vld [vmem:[%s282 + $0x8] sm:$0xf]
        %v339 = vunpack.c.l.b16 %v332
        %v340 = vunpack.c.l.b16 %v333
        %v341 = vpack.c.b16 %v340, %v339
        %v344 = vunpack.c.l.b16 %v334
        %v345 = vunpack.c.l.b16 %v335
        %v346 = vpack.c.b16 %v340, %v344
        %v347 = vpack.c.b16 %v345, %v345
        %vm348 = vcmask 1045504
        %v349 = vrot.slane %v346, 2
        %v350 = vrot.slane %v347, 2
        %v351 = vsel %vm348, %v349, %v350
        %352 = vrot.lane.b32.xlu0 %v351, 24
        %v353 = vpop.permute.xlu0 %352
        %v355 = vunpack.c.l.b16 %v336
        %v356 = vpack.c.b16 %v355, %v340
        %357 = vrot.lane.b32.xlu0 %v356, 48
        %v358 = vpop.permute.xlu0 %357
        %vm359 = vcmask 195584
        %v362 = vsel %vm359, %v341, %v353
        %vm363 = vcmask 392192
        %v365 = vsel %vm363, %v362, %v358
        %v366 = vld [vmem:[%s291] sm:$0xf]
        %v367 = vld [vmem:[%s291 + $0x4] sm:$0xf]
        %v368 = vld [vmem:[%s291 + $0x8] sm:$0xf]
        %v369 = vld [vmem:[%s291 + $0xc] sm:$0xf]
        %v370 = vld [vmem:[%s291 + $0x10] sm:$0xf]
        %v371 = vld [vmem:[%s291 + $0x14] sm:$0xf]
        %v372 = vld [vmem:[%s291 + $0x18] sm:$0xf]
        %v373 = vld [vmem:[%s291 + $0x1c] sm:$0xf]
        %v374 = vld [vmem:[%s291 + $0x20] sm:$0xf]
        %v384 = vunpack.c.l.b16 %v366
        %v385 = vunpack.c.l.b16 %v367
        %v386 = vunpack.c.l.b16 %v368
        %v387 = vunpack.c.l.b16 %v369
        %v388 = vunpack.c.l.b16 %v370
        %v389 = vunpack.c.l.b16 %v371
        %v390 = vunpack.c.l.b16 %v372
        %v391 = vunpack.c.l.b16 %v373
        %v392 = vunpack.c.l.b16 %v374
        %v393 = vpack.c.b16 %v385, %v384
        %v394 = vpack.c.b16 %v387, %v386
        %v395 = vpack.c.b16 %v389, %v388
        %v396 = vpack.c.b16 %v391, %v390
        %v397 = vpack.c.b16 %v392, %v392
        %vm402 = vcmask 588800
        %v403 = vsel %vm402, %v365, 0
        %vm405 = vcmask 1043456
        %v407 = vsel %vm405, %v397, 0
        %409 = vmatprep.subr.bf16.mxu0 0
        %410 = vmatpush1.bf16.msra.mxu0 %v393
        %411 = vmatprep.subr.bf16.mxu0 0
        %412 = vmatpush1.bf16.msra.mxu0 %v394
        %413 = vmatprep.subr.bf16.mxu0 0
        %414 = vmatpush1.bf16.msra.mxu0 %v395
        %415 = vmatprep.subr.bf16.mxu0 0
        %416 = vmatpush1.bf16.msra.mxu0 %v396
        %417 = vmatprep.subr.bf16.mxu0 0
        %418 = vmatpush1.bf16.msra.mxu0 %v407
        %419 = vmatprep.subr.bf16.mxu0 0
        %420 = vmatpush1.bf16.msra.mxu0 0
        %421 = vmatprep.subr.bf16.mxu0 0
        %422 = vmatpush1.bf16.msra.mxu0 0
        %423 = vmatprep.subr.bf16.mxu0 0
        %424 = vmatpush1.bf16.msra.mxu0 0
        %425 = vmatprep.subr.bf16.mxu0 0
        %426 = vmatpush1.bf16.msra.mxu0 0
        %427 = vmatprep.subr.bf16.mxu0 0
        %428 = vmatpush1.bf16.msra.mxu0 0
        %429 = vmatprep.subr.bf16.mxu0 0
        %430 = vmatpush1.bf16.msra.mxu0 0
        %431 = vmatprep.subr.bf16.mxu0 0
        %432 = vmatpush1.bf16.msra.mxu0 0
        %433 = vmatprep.subr.bf16.mxu0 0
        %434 = vmatpush1.bf16.msra.mxu0 0
        %435 = vmatprep.subr.bf16.mxu0 0
        %436 = vmatpush1.bf16.msra.mxu0 0
        %437 = vmatprep.subr.bf16.mxu0 0
        %438 = vmatpush1.bf16.msra.mxu0 0
        %439 = vmatprep.subr.bf16.mxu0 0
        %440 = vmatpush1.bf16.msra.mxu0 0
        %441 = vmatprep.mubr.bf16.mxu0 0
        %442 = vmatmul.mubr.bf16.gmra.mrb[0].mxu0 %v403
        %v443 = vpop.f32.mrb[0].mxu0
        %v444 = vadd.f32 0.0, %v443
        %v445 = vpop.f32.mrb[0].mxu0
        %v446 = vpop.f32.mrb[0].mxu0
        %v447 = vadd.f32 0.0, %v446
        %v448 = vpop.f32.mrb[0].mxu0
        %449 = vdwg.mxu0
        %p450 = scmp.eq.s32.totalorder %s37, 0
        // Predicated region
        $region45: #{tpu_custom_call.1} parent=31 // pred_check
          %p451 = pneg %p450
        $region46: #{tpu_custom_call.1} parent=31 // pred_check_branch
          %453 = sbr.rel (%p451) target = $region48
        $region47: #{tpu_custom_call.1} parent=31 // pred_region
          %v454 = vld [vmem:[#allocation7] sm:$0x1]
          %v456 = vlaneseq
          %v457 = vshrl.u32 %v456, 7
          %v458 = vsub.s32 0, %v457
          %v459 = vrot.slane %v454, %v458
          %v461 = vadd.f32 %v444, %v459
          %v462 = vadd.f32 %v447, %v459
          %vm463 = vcmask 130048
          %464 = vst.msk [vmem:[%s322] sm:$0xff] %vm463, %v461
          %465 = vst.msk [vmem:[%s322 + $0x8] sm:$0xff] %vm463, %v462
        $region48: #{tpu_custom_call.1} parent=31 // pred_fallthru
          _
        %p466 = scmp.gt.s32.totalorder %s37, 0
        // Predicated region
        $region49: #{tpu_custom_call.1} parent=31 // pred_check
          %p467 = pneg %p466
        $region50: #{tpu_custom_call.1} parent=31 // pred_check_branch
          %469 = sbr.rel (%p467) target = $region52
        $region51: #{tpu_custom_call.1} parent=31 // pred_region
          %v470 = vld [vmem:[%s322] sm:$0xff]
          %v471 = vld [vmem:[%s322 + $0x8] sm:$0xff]
          %v472 = vadd.f32 %v470, %v444
          %v473 = vadd.f32 %v471, %v447
          %vm474 = vcmask 130048
          %475 = vst.msk [vmem:[%s322] sm:$0xff] %vm474, %v472
          %476 = vst.msk [vmem:[%s322 + $0x8] sm:$0xff] %vm474, %v473
        $region52: #{tpu_custom_call.1} parent=31 // pred_fallthru
          _
        %p477 = scmp.eq.s32.totalorder %s37, 2
        // Predicated region
        $region53: #{tpu_custom_call.1} parent=31 // pred_check
          %p478 = pneg %p477
        $region54: #{tpu_custom_call.1} parent=31 // pred_check_branch
          %480 = sbr.rel (%p478) target = $region56
        $region55: #{tpu_custom_call.1} parent=31 // pred_region
          %v481 = vld [vmem:[%s322] sm:$0xff]
          %v482 = vld [vmem:[%s322 + $0x8] sm:$0xff]
          %vm483 = vcmask 130048
          %v484 = vsel %vm483, %v481, 0.0
          %v485 = vsel %vm483, %v482, 0.0
          %v486 = vadd.f32 %v484, %v485
          %v487 = vrot.slane %v486, 4
          %v488 = vadd.f32 %v486, %v487
          %v489 = vrot.slane %v488, 2
          %v490 = vadd.f32 %v488, %v489
          %v491 = vrot.slane %v490, 1
          %v492 = vadd.f32 %v490, %v491
          %v493 = vmul.f32 %v481, %v481
          %v494 = vmul.f32 %v482, %v482
          %v495 = vsel %vm483, %v493, 0.0
          %v496 = vsel %vm483, %v494, 0.0
          %v497 = vadd.f32 %v495, %v496
          %v498 = vrot.slane %v497, 4
          %v499 = vadd.f32 %v497, %v498
          %v500 = vrot.slane %v499, 2
          %v501 = vadd.f32 %v499, %v500
          %v502 = vrot.slane %v501, 1
          %v503 = vadd.f32 %v501, %v502
          %vm504 = vcmask 1040384
          %v505 = vsel %vm504, %v492, %v503
          %vm506 = vcmask 123904
          %507 = vst.msk [vmem:[%s329] sm:$0x3] %vm506, %v505
        $region56: #{tpu_custom_call.1} parent=31 // pred_fallthru
          _
        %s508 = sand.u32 %s150, 1
        %s509 = scalar_lea.sflag [#allocation4], %s508
        %s510 = sand.u32 %s150, 1
        %s511 = smul.addr %s510, 16
        %s512 = scalar_lea.vmem [#allocation8], %s511
        %s513 = sand.u32 %s180, 1
        %s514 = scalar_lea.sflag [#allocation10], %s513
        %s515 = sand.u32 %s180, 1
        %s516 = smul.addr %s515, 2
        %s517 = scalar_lea.vmem [#allocation9], %s516
        // Predicated region
        $region57: #{tpu_custom_call.1} parent=31 // pred_check
          %p518 = pneg %p160
        $region58: #{tpu_custom_call.1} parent=31 // pred_check_branch
          %520 = sbr.rel (%p518) target = $region60
        $region59: #{tpu_custom_call.1} parent=31 // pred_region
          %s522 = ssub.s32 256, 256
          %523 = vsyncadd %s509, %s522
          %s524 = smul.addr %s35, 2
          %s525 = sadd.s32 %s36, %s524
          %s526 = smul.addr %s34, 8
          %s527 = sadd.s32 %s525, %s526
          %s528 = smul.addr %s527, 128
          %s529 = scalar_lea.hbm %s3, %s528
          %s530 = sshll.u32 %s512, 4
          %s531 = int_to_ptr.vmem [resolvable:$true] %s530
          %536 = dma.vmem_to_hbm [thread:$0]  %s531, 256, %s529, %s509, 128, 128, 8
        $region60: #{tpu_custom_call.1} parent=31 // pred_fallthru
          _
        // Predicated region
        $region61: #{tpu_custom_call.1} parent=31 // pred_check
          %p537 = pneg %p190
        $region62: #{tpu_custom_call.1} parent=31 // pred_check_branch
          %539 = sbr.rel (%p537) target = $region64
        $region63: #{tpu_custom_call.1} parent=31 // pred_region
          %s541 = ssub.s32 32, 32
          %542 = vsyncadd %s514, %s541
          %s543 = sadd.s32 %s36, %s35
          %s544 = smul.addr %s34, 4
          %s545 = sadd.s32 %s543, %s544
          %s546 = smul.addr %s545, 32
          %s547 = scalar_lea.hbm %s4, %s546
          %s549 = sshll.u32 %s517, 4
          %s550 = int_to_ptr.vmem [resolvable:$true] %s549
          %552 = dma.vmem_to_hbm [thread:$0]  %s550, 32, %s547, %s514
        $region64: #{tpu_custom_call.1} parent=31 // pred_fallthru
          _
      $region32: #{tpu_custom_call.1} parent=5 // pred_fallthru
        _
      %p553 = scmp.le.s32.totalorder 2, %s23
      // Predicated region
      $region65: #{tpu_custom_call.1} parent=5 // pred_check
        %p554 = pneg %p553
      $region66: #{tpu_custom_call.1} parent=5 // pred_check_branch
        %556 = sbr.rel (%p554) target = $region68
      $region67: #{tpu_custom_call.1} parent=5 // pred_region
        %s557 = ssub.s32 %s23, 2
        // Predicated region
        $region69: #{tpu_custom_call.1} parent=67 // pred_check
          %p558 = pneg %p166
        $region70: #{tpu_custom_call.1} parent=67 // pred_check_branch
          %560 = sbr.rel (%p558) target = $region72
        $region71: #{tpu_custom_call.1} parent=67 // pred_region
          %s561 = sand.u32 %s151, 1
          %s562 = scalar_lea.sflag [#allocation4], %s561
          %s563 = sand.u32 %s151, 1
          %s564 = smul.addr %s563, 16
          %s565 = scalar_lea.vmem [#allocation8], %s564
          %566 = dma.done %s562, 256
        $region72: #{tpu_custom_call.1} parent=67 // pred_fallthru
          _
        // Predicated region
        $region73: #{tpu_custom_call.1} parent=67 // pred_check
          %p567 = pneg %p196
        $region74: #{tpu_custom_call.1} parent=67 // pred_check_branch
          %569 = sbr.rel (%p567) target = $region76
        $region75: #{tpu_custom_call.1} parent=67 // pred_region
          %s570 = sand.u32 %s181, 1
          %s571 = scalar_lea.sflag [#allocation10], %s570
          %s572 = sand.u32 %s181, 1
          %s573 = smul.addr %s572, 2
          %s574 = scalar_lea.vmem [#allocation9], %s573
          %575 = dma.done %s571, 32
        $region76: #{tpu_custom_call.1} parent=67 // pred_fallthru
          _
      $region68: #{tpu_custom_call.1} parent=5 // pred_fallthru
        _
    $region6: #{tpu_custom_call.1} parent=1 // loop_footer
      %s27 = sadd.s32 1, %s23
    $region7: #{tpu_custom_call.1} parent=1 // loop_footer_branch
      %22 = sbr.rel target = $region3
    $region8: #{tpu_custom_call.1} parent=1 // loop_exit
      _
    %576 = vsyncpa [#allocation3], 1
    %s577 = scalar_lea.sflag [#allocation3], 1
    %578 = vsyncpa %s577, 1
    %579 = vsyncpa [#allocation6], 1
    %s580 = scalar_lea.sflag [#allocation6], 1
    %581 = vsyncpa %s580, 1
    %582 = vsyncpa [#allocation4], 1
    %s583 = scalar_lea.sflag [#allocation4], 1
    %584 = vsyncpa %s583, 1
    %585 = vsyncpa [#allocation10], 1
    %s586 = scalar_lea.sflag [#allocation10], 1
    %587 = vsyncpa %s586, 1

</llo_original>
